<compile_context>
chip_gen: v7x
topology: tpu7x:2x2x1
jax: 0.10.0
libtpu: 0.0.40
codegen_flags: <defaults>
</compile_context>

<pallas_src>
import functools

import jax
import jax.numpy as jnp
from jax.experimental import pallas as pl
from jax.experimental.pallas import tpu as pltpu


def decoder_kernel(x_ref, w1_ref, b1_ref, w2_ref, b2_ref, w3_ref, b3_ref, out_ref):
    x = x_ref[...]

    # fc1 + relu  (bf16 MXU operands, f32 accumulate / elementwise)
    h = jnp.dot(x.astype(jnp.bfloat16), w1_ref[...],
                preferred_element_type=jnp.float32) + b1_ref[...]
    h = jnp.maximum(h, 0.0)

    # fc2 + relu
    h = jnp.dot(h.astype(jnp.bfloat16), w2_ref[...],
                preferred_element_type=jnp.float32) + b2_ref[...]
    h = jnp.maximum(h, 0.0)

    # fc3 (lane-dense padded output)
    out = jnp.dot(h.astype(jnp.bfloat16), w3_ref[...],
                  preferred_element_type=jnp.float32) + b3_ref[...]
    out_ref[...] = out.astype(out_ref.dtype)


@functools.partial(jax.jit, static_argnames=("block_b",))
def decoder_forward(x, params, *, block_b=128):
    B, z_dim = x.shape
    hidden = params["w1"].shape[1]
    out_dim = params["w3"].shape[1]

    # Cast matmul weights to bf16 once (biases stay f32 for the epilogue adds).
    w1 = params["w1"].astype(jnp.bfloat16)
    w2 = params["w2"].astype(jnp.bfloat16)
    w3 = params["w3"].astype(jnp.bfloat16)
    b1, b2, b3 = params["b1"], params["b2"], params["b3"]

    # Pad the output feature dim up to a multiple of 128 -> lane-dense stores.
    n_pad = ((out_dim + 127) // 128) * 128
    if n_pad != out_dim:
        w3 = jnp.pad(w3, ((0, 0), (0, n_pad - out_dim)))
        b3 = jnp.pad(b3, ((0, 0), (0, n_pad - out_dim)))

    # Batch tiling: multiple-of-8 sublane blocks; pad batch to a whole number
    # of blocks so every input load / output store is full (no masking).
    tb = min(block_b, ((B + 7) // 8) * 8)
    tb = ((tb + 7) // 8) * 8
    b_pad = ((B + tb - 1) // tb) * tb
    x_p = x if b_pad == B else jnp.pad(x, ((0, b_pad - B), (0, 0)))

    const = lambda i: (0, 0)   # weights/biases: same block every grid step
    out = pl.pallas_call(
        decoder_kernel,
        out_shape=jax.ShapeDtypeStruct((b_pad, n_pad), jnp.float32),
        grid_spec=pltpu.PrefetchScalarGridSpec(
            num_scalar_prefetch=0,
            grid=(b_pad // tb,),
            in_specs=[
                pl.BlockSpec((tb, z_dim), lambda i: (i, 0)),   # x block
                pl.BlockSpec((z_dim, hidden), const),          # w1
                pl.BlockSpec((1, hidden), const),              # b1
                pl.BlockSpec((hidden, hidden), const),         # w2
                pl.BlockSpec((1, hidden), const),               # b2
                pl.BlockSpec((hidden, n_pad), const),           # w3 (padded)
                pl.BlockSpec((1, n_pad), const),                # b3 (padded)
            ],
            out_specs=pl.BlockSpec((tb, n_pad), lambda i: (i, 0)),
        ),
        compiler_params=pltpu.CompilerParams(
            dimension_semantics=("parallel",)),
    )(x_p, w1, b1, w2, b2, w3, b3)

    return out[:B, :out_dim]


def init_params(key, z_dim, output_dim, hidden_dim):
    """Deterministic synthetic init (PyTorch-Linear-style uniform bounds)."""
    def linear(key, fan_in, fan_out):
        kw, kb = jax.random.split(key)
        bound = 1.0 / jnp.sqrt(fan_in)
        w = jax.random.uniform(kw, (fan_in, fan_out), jnp.float32, -bound, bound)
        b = jax.random.uniform(kb, (1, fan_out), jnp.float32, -bound, bound)
        return w, b

    k1, k2, k3 = jax.random.split(key, 3)
    w1, b1 = linear(k1, z_dim, hidden_dim)
    w2, b2 = linear(k2, hidden_dim, hidden_dim)
    w3, b3 = linear(k3, hidden_dim, output_dim)
    return {"w1": w1, "b1": b1, "w2": w2, "b2": b2, "w3": w3, "b3": b3}


def decoder_reference(x, params):
    """Pure-jnp reference using the same bf16-operand / f32-accumulate recipe."""
    h = jnp.dot(x.astype(jnp.bfloat16), params["w1"].astype(jnp.bfloat16),
                preferred_element_type=jnp.float32) + params["b1"]
    h = jnp.maximum(h, 0.0)
    h = jnp.dot(h.astype(jnp.bfloat16), params["w2"].astype(jnp.bfloat16),
                preferred_element_type=jnp.float32) + params["b2"]
    h = jnp.maximum(h, 0.0)
    return jnp.dot(h.astype(jnp.bfloat16), params["w3"].astype(jnp.bfloat16),
                   preferred_element_type=jnp.float32) + params["b3"]


def decoder_reference_f32(x, params):
    """Full-f32 math, identical to the PyTorch module."""
    h = jnp.maximum(x @ params["w1"] + params["b1"], 0.0)
    h = jnp.maximum(h @ params["w2"] + params["b2"], 0.0)
    return h @ params["w3"] + params["b3"]


if __name__ == "__main__":
    B, z_dim, hidden_dim, output_dim = 256, 8, 64, 16

    key = jax.random.PRNGKey(0)
    k_params, k_x = jax.random.split(key)
    params = init_params(k_params, z_dim, output_dim, hidden_dim)
    x = jax.random.normal(k_x, (B, z_dim), jnp.float32)

    out = decoder_forward(x, params)
    jax.block_until_ready(out)
    assert out.shape == (B, output_dim)

    # Match the bf16-operand / f32-accumulate recipe exactly.
    ref = decoder_reference(x, params)
    assert jnp.allclose(out, ref, atol=2e-3, rtol=2e-3), \
        float(jnp.max(jnp.abs(out - ref)))

    # Loose check against the full-f32 PyTorch-equivalent math (bf16 matmul error).
    ref32 = decoder_reference_f32(x, params)
    assert jnp.allclose(out, ref32, atol=5e-2, rtol=5e-2)

    print("KERNEL_OK")
</pallas_src>

<mosaic_0001>
module attributes {stable_mosaic.version = 11 : i64} {
  func.func @decoder_kernel(%arg0: i32, %arg1: memref<128x8xf32, #tpu.memory_space<vmem>>, %arg2: memref<8x64xbf16, #tpu.memory_space<vmem>>, %arg3: memref<1x64xf32, #tpu.memory_space<vmem>>, %arg4: memref<64x64xbf16, #tpu.memory_space<vmem>>, %arg5: memref<1x64xf32, #tpu.memory_space<vmem>>, %arg6: memref<64x128xbf16, #tpu.memory_space<vmem>>, %arg7: memref<1x128xf32, #tpu.memory_space<vmem>>, %arg8: memref<128x128xf32, #tpu.memory_space<vmem>>) attributes {dimension_semantics = [#tpu.dimension_semantics<parallel>], iteration_bounds = array<i64: 2>, scalar_prefetch = 0 : i64, scratch_operands = 0 : i64, tpu.core_type = #tpu.core_type<tc>, window_params = [{transform_indices = @transform_0, window_bounds = array<i64: 128, 8>}, {pipeline_mode = #tpu.pipeline_mode<synchronous>, transform_indices = @transform_1, window_bounds = array<i64: 8, 64>}, {pipeline_mode = #tpu.pipeline_mode<synchronous>, transform_indices = @transform_2, window_bounds = array<i64: 1, 64>}, {pipeline_mode = #tpu.pipeline_mode<synchronous>, transform_indices = @transform_3, window_bounds = array<i64: 64, 64>}, {pipeline_mode = #tpu.pipeline_mode<synchronous>, transform_indices = @transform_4, window_bounds = array<i64: 1, 64>}, {pipeline_mode = #tpu.pipeline_mode<synchronous>, transform_indices = @transform_5, window_bounds = array<i64: 64, 128>}, {pipeline_mode = #tpu.pipeline_mode<synchronous>, transform_indices = @transform_6, window_bounds = array<i64: 1, 128>}, {transform_indices = @transform_7, window_bounds = array<i64: 128, 128>}]} {
    %c0 = arith.constant 0 : index
    %c0_0 = arith.constant 0 : index
    %0 = vector.load %arg1[%c0, %c0_0] : memref<128x8xf32, #tpu.memory_space<vmem>>, vector<128x8xf32>
    %1 = arith.truncf %0 : vector<128x8xf32> to vector<128x8xbf16>
    %c0_1 = arith.constant 0 : index
    %c0_2 = arith.constant 0 : index
    %2 = vector.load %arg2[%c0_1, %c0_2] : memref<8x64xbf16, #tpu.memory_space<vmem>>, vector<8x64xbf16>
    %cst = arith.constant dense<0.000000e+00> : vector<128x64xf32>
    %3 = tpu.matmul %1, %2, %cst {dimension_numbers = #tpu.dot_dimension_numbers<[1], [0], [0], [1], [0, 0, 1, 1], [], []>} : vector<128x8xbf16>, vector<8x64xbf16>, vector<128x64xf32> -> vector<128x64xf32>
    %c0_3 = arith.constant 0 : index
    %c0_4 = arith.constant 0 : index
    %4 = vector.load %arg3[%c0_3, %c0_4] : memref<1x64xf32, #tpu.memory_space<vmem>>, vector<1x64xf32>
    %5 = vector.broadcast %4 : vector<1x64xf32> to vector<128x64xf32>
    %6 = arith.addf %3, %5 : vector<128x64xf32>
    %cst_5 = arith.constant 0.000000e+00 : f32
    %7 = vector.broadcast %cst_5 : f32 to vector<128x64xf32>
    %8 = arith.maximumf %6, %7 : vector<128x64xf32>
    %9 = arith.truncf %8 : vector<128x64xf32> to vector<128x64xbf16>
    %c0_6 = arith.constant 0 : index
    %c0_7 = arith.constant 0 : index
    %10 = vector.load %arg4[%c0_6, %c0_7] : memref<64x64xbf16, #tpu.memory_space<vmem>>, vector<64x64xbf16>
    %cst_8 = arith.constant dense<0.000000e+00> : vector<128x64xf32>
    %11 = tpu.matmul %9, %10, %cst_8 {dimension_numbers = #tpu.dot_dimension_numbers<[1], [0], [0], [1], [0, 0, 1, 1], [], []>} : vector<128x64xbf16>, vector<64x64xbf16>, vector<128x64xf32> -> vector<128x64xf32>
    %c0_9 = arith.constant 0 : index
    %c0_10 = arith.constant 0 : index
    %12 = vector.load %arg5[%c0_9, %c0_10] : memref<1x64xf32, #tpu.memory_space<vmem>>, vector<1x64xf32>
    %13 = vector.broadcast %12 : vector<1x64xf32> to vector<128x64xf32>
    %14 = arith.addf %11, %13 : vector<128x64xf32>
    %cst_11 = arith.constant 0.000000e+00 : f32
    %15 = vector.broadcast %cst_11 : f32 to vector<128x64xf32>
    %16 = arith.maximumf %14, %15 : vector<128x64xf32>
    %17 = arith.truncf %16 : vector<128x64xf32> to vector<128x64xbf16>
    %c0_12 = arith.constant 0 : index
    %c0_13 = arith.constant 0 : index
    %18 = vector.load %arg6[%c0_12, %c0_13] : memref<64x128xbf16, #tpu.memory_space<vmem>>, vector<64x128xbf16>
    %cst_14 = arith.constant dense<0.000000e+00> : vector<128x128xf32>
    %19 = tpu.matmul %17, %18, %cst_14 {dimension_numbers = #tpu.dot_dimension_numbers<[1], [0], [0], [1], [0, 0, 1, 1], [], []>} : vector<128x64xbf16>, vector<64x128xbf16>, vector<128x128xf32> -> vector<128x128xf32>
    %c0_15 = arith.constant 0 : index
    %c0_16 = arith.constant 0 : index
    %20 = vector.load %arg7[%c0_15, %c0_16] : memref<1x128xf32, #tpu.memory_space<vmem>>, vector<1x128xf32>
    %21 = vector.broadcast %20 : vector<1x128xf32> to vector<128x128xf32>
    %22 = arith.addf %19, %21 : vector<128x128xf32>
    %c0_17 = arith.constant 0 : index
    %c0_18 = arith.constant 0 : index
    %23 = vector.load %arg8[%c0_17, %c0_18] : memref<128x128xf32, #tpu.memory_space<vmem>>, vector<128x128xf32>
    tpu.vector_store %arg8[%c0_17, %c0_18], %22 {strides = array<i32>} : memref<128x128xf32, #tpu.memory_space<vmem>>, vector<128x128xf32>,
    return
  }
  func.func @transform_0(%arg0: i32) -> (i32, i32) {
    %c0_i32 = arith.constant 0 : i32
    %c0_i32_0 = arith.constant 0 : i32
    return %arg0, %c0_i32 : i32, i32
  }
  func.func @transform_1(%arg0: i32) -> (i32, i32) {
    %c0_i32 = arith.constant 0 : i32
    %c0_i32_0 = arith.constant 0 : i32
    %c0_i32_1 = arith.constant 0 : i32
    return %c0_i32, %c0_i32_0 : i32, i32
  }
  func.func @transform_2(%arg0: i32) -> (i32, i32) {
    %c0_i32 = arith.constant 0 : i32
    %c0_i32_0 = arith.constant 0 : i32
    %c0_i32_1 = arith.constant 0 : i32
    return %c0_i32, %c0_i32_0 : i32, i32
  }
  func.func @transform_3(%arg0: i32) -> (i32, i32) {
    %c0_i32 = arith.constant 0 : i32
    %c0_i32_0 = arith.constant 0 : i32
    %c0_i32_1 = arith.constant 0 : i32
    return %c0_i32, %c0_i32_0 : i32, i32
  }
  func.func @transform_4(%arg0: i32) -> (i32, i32) {
    %c0_i32 = arith.constant 0 : i32
    %c0_i32_0 = arith.constant 0 : i32
    %c0_i32_1 = arith.constant 0 : i32
    return %c0_i32, %c0_i32_0 : i32, i32
  }
  func.func @transform_5(%arg0: i32) -> (i32, i32) {
    %c0_i32 = arith.constant 0 : i32
    %c0_i32_0 = arith.constant 0 : i32
    %c0_i32_1 = arith.constant 0 : i32
    return %c0_i32, %c0_i32_0 : i32, i32
  }
  func.func @transform_6(%arg0: i32) -> (i32, i32) {
    %c0_i32 = arith.constant 0 : i32
    %c0_i32_0 = arith.constant 0 : i32
    %c0_i32_1 = arith.constant 0 : i32
    return %c0_i32, %c0_i32_0 : i32, i32
  }
  func.func @transform_7(%arg0: i32) -> (i32, i32) {
    %c0_i32 = arith.constant 0 : i32
    %c0_i32_0 = arith.constant 0 : i32
    return %arg0, %c0_i32 : i32, i32
  }
}

</mosaic_0001>

<llo_original>
// kernel: decoder_forward.1
$region0: #{decoder_forward.1}
  #allocation0 [shape = 'u32[]', space=smem, size = 0x4, offset = 0x4, fixed_abs, tag = 'smem constant byte address 0x4 - core index']
  #allocation1 [shape = 'u32[144,128]{1,0:T(1,128)}', space=vmem, size = 0x12000, scoped, tag = 'internal scratch']
  %s0 = inlined_call_operand.vmem [shape: f32[256,8], index: 0, kind: input, shape index: {}]
  %s1 = inlined_call_operand.vmem [shape: bf16[8,64], index: 1, kind: input, shape index: {}]
  %s2 = inlined_call_operand.vmem [shape: f32[1,64], index: 2, kind: input, shape index: {}]
  %s3 = inlined_call_operand.vmem [shape: bf16[64,64], index: 3, kind: input, shape index: {}]
  %s4 = inlined_call_operand.vmem [shape: f32[1,64], index: 4, kind: input, shape index: {}]
  %s5 = inlined_call_operand.vmem [shape: bf16[64,128], index: 5, kind: input, shape index: {}]
  %s6 = inlined_call_operand.vmem [shape: f32[1,128], index: 6, kind: input, shape index: {}]
  %s7 = inlined_call_operand.vmem [shape: f32[256,128], index: 7, kind: output, shape index: {}]
  %s8 = sld [smem:[#allocation0]]
  $region61: #{decoder_forward.1} parent=0
    _
  %s10 = ssub.s32 1, %s8
  %s11 = scalar_select 0, %s10, %s8
  loop: start=0, step=1, limit=4
  $region2: #{decoder_forward.1} parent=0 // loop_pre_header
    _
  $region3: #{decoder_forward.1} parent=0 // loop_header
    %s13 = sphi 0, %s17
    %p14 = scmp.ge.s32.totalorder %s13, 4
    %s23 = sphi 0, %s25
    %s26 = sphi 0, %s23
    %s27 = sphi 0, %s26
    %s43 = sphi 0, %s27
    %s47 = sphi 0, %s47
    %s49 = sphi 0, %s47
    %s50 = sphi 0, %s49
    %s64 = sphi 0, %s50
    %s68 = sphi 0, %s68
    %s70 = sphi 0, %s68
    %s71 = sphi 0, %s70
    %s85 = sphi 0, %s71
    %s89 = sphi 0, %s89
    %s91 = sphi 0, %s89
    %s92 = sphi 0, %s91
    %s106 = sphi 0, %s92
    %s110 = sphi 0, %s110
    %s112 = sphi 0, %s110
    %s113 = sphi 0, %s112
    %s127 = sphi 0, %s113
    %s131 = sphi 0, %s131
    %s133 = sphi 0, %s131
    %s134 = sphi 0, %s133
    %s148 = sphi 0, %s134
    %s152 = sphi 0, %s152
    %s154 = sphi 0, %s152
    %s155 = sphi 0, %s154
    %s169 = sphi 0, %s155
    %s175 = sphi 0, %s177
    %s178 = sphi 0, %s175
    %s179 = sphi 0, %s178
    %s195 = sphi 0, %s179
  $region4: #{decoder_forward.1} parent=0 // loop_header_branch
    %16 = sbr.rel (%p14) target = $region8
  $region5: #{decoder_forward.1} parent=0 // loop_body
    %s18 = ssub.s32 %s13, 1
    %s19 = ssub.s32 %s13, 2
    %s20 = sadd.s32 %s13, 1
    %s21 = ssub.s32 %s13, %s20
    %p22 = scmp.eq.s32.totalorder %s21, 0
    %s24 = sadd.s32 %s23, 1
    %s25 = scalar_select %p22, %s23, %s24
    %p28 = pneg %p22
    %p29 = scmp.eq.s32.totalorder %s13, 1
    %p30 = por %p28, %p29
    %p31 = scmp.ne.s32.totalorder %s23, %s26
    %p32 = scmp.eq.s32.totalorder %s13, 0
    %p33 = por %p31, %p32
    %p34 = scmp.ne.s32.totalorder %s23, %s26
    %p35 = scmp.eq.s32.totalorder %s18, 1
    %p36 = por %p34, %p35
    %p37 = scmp.ne.s32.totalorder %s26, %s27
    %p38 = scmp.eq.s32.totalorder %s18, 0
    %p39 = por %p37, %p38
    %p40 = scmp.ne.s32.totalorder %s26, %s27
    %p41 = scmp.eq.s32.totalorder %s19, 1
    %p42 = por %p40, %p41
    %p44 = scmp.ne.s32.totalorder %s27, %s43
    %p45 = scmp.eq.s32.totalorder %s19, 0
    %p46 = por %p44, %p45
    %s48 = sadd.s32 %s47, 1
    %p51 = scmp.eq.s32.totalorder %s13, 1
    %p52 = scmp.ne.s32.totalorder %s47, %s49
    %p53 = scmp.eq.s32.totalorder %s13, 0
    %p54 = por %p52, %p53
    %p55 = scmp.ne.s32.totalorder %s47, %s49
    %p56 = scmp.eq.s32.totalorder %s18, 1
    %p57 = por %p55, %p56
    %p58 = scmp.ne.s32.totalorder %s49, %s50
    %p59 = scmp.eq.s32.totalorder %s18, 0
    %p60 = por %p58, %p59
    %p61 = scmp.ne.s32.totalorder %s49, %s50
    %p62 = scmp.eq.s32.totalorder %s19, 1
    %p63 = por %p61, %p62
    %p65 = scmp.ne.s32.totalorder %s50, %s64
    %p66 = scmp.eq.s32.totalorder %s19, 0
    %p67 = por %p65, %p66
    %s69 = sadd.s32 %s68, 1
    %p72 = scmp.eq.s32.totalorder %s13, 1
    %p73 = scmp.ne.s32.totalorder %s68, %s70
    %p74 = scmp.eq.s32.totalorder %s13, 0
    %p75 = por %p73, %p74
    %p76 = scmp.ne.s32.totalorder %s68, %s70
    %p77 = scmp.eq.s32.totalorder %s18, 1
    %p78 = por %p76, %p77
    %p79 = scmp.ne.s32.totalorder %s70, %s71
    %p80 = scmp.eq.s32.totalorder %s18, 0
    %p81 = por %p79, %p80
    %p82 = scmp.ne.s32.totalorder %s70, %s71
    %p83 = scmp.eq.s32.totalorder %s19, 1
    %p84 = por %p82, %p83
    %p86 = scmp.ne.s32.totalorder %s71, %s85
    %p87 = scmp.eq.s32.totalorder %s19, 0
    %p88 = por %p86, %p87
    %s90 = sadd.s32 %s89, 1
    %p93 = scmp.eq.s32.totalorder %s13, 1
    %p94 = scmp.ne.s32.totalorder %s89, %s91
    %p95 = scmp.eq.s32.totalorder %s13, 0
    %p96 = por %p94, %p95
    %p97 = scmp.ne.s32.totalorder %s89, %s91
    %p98 = scmp.eq.s32.totalorder %s18, 1
    %p99 = por %p97, %p98
    %p100 = scmp.ne.s32.totalorder %s91, %s92
    %p101 = scmp.eq.s32.totalorder %s18, 0
    %p102 = por %p100, %p101
    %p103 = scmp.ne.s32.totalorder %s91, %s92
    %p104 = scmp.eq.s32.totalorder %s19, 1
    %p105 = por %p103, %p104
    %p107 = scmp.ne.s32.totalorder %s92, %s106
    %p108 = scmp.eq.s32.totalorder %s19, 0
    %p109 = por %p107, %p108
    %s111 = sadd.s32 %s110, 1
    %p114 = scmp.eq.s32.totalorder %s13, 1
    %p115 = scmp.ne.s32.totalorder %s110, %s112
    %p116 = scmp.eq.s32.totalorder %s13, 0
    %p117 = por %p115, %p116
    %p118 = scmp.ne.s32.totalorder %s110, %s112
    %p119 = scmp.eq.s32.totalorder %s18, 1
    %p120 = por %p118, %p119
    %p121 = scmp.ne.s32.totalorder %s112, %s113
    %p122 = scmp.eq.s32.totalorder %s18, 0
    %p123 = por %p121, %p122
    %p124 = scmp.ne.s32.totalorder %s112, %s113
    %p125 = scmp.eq.s32.totalorder %s19, 1
    %p126 = por %p124, %p125
    %p128 = scmp.ne.s32.totalorder %s113, %s127
    %p129 = scmp.eq.s32.totalorder %s19, 0
    %p130 = por %p128, %p129
    %s132 = sadd.s32 %s131, 1
    %p135 = scmp.eq.s32.totalorder %s13, 1
    %p136 = scmp.ne.s32.totalorder %s131, %s133
    %p137 = scmp.eq.s32.totalorder %s13, 0
    %p138 = por %p136, %p137
    %p139 = scmp.ne.s32.totalorder %s131, %s133
    %p140 = scmp.eq.s32.totalorder %s18, 1
    %p141 = por %p139, %p140
    %p142 = scmp.ne.s32.totalorder %s133, %s134
    %p143 = scmp.eq.s32.totalorder %s18, 0
    %p144 = por %p142, %p143
    %p145 = scmp.ne.s32.totalorder %s133, %s134
    %p146 = scmp.eq.s32.totalorder %s19, 1
    %p147 = por %p145, %p146
    %p149 = scmp.ne.s32.totalorder %s134, %s148
    %p150 = scmp.eq.s32.totalorder %s19, 0
    %p151 = por %p149, %p150
    %s153 = sadd.s32 %s152, 1
    %p156 = scmp.eq.s32.totalorder %s13, 1
    %p157 = scmp.ne.s32.totalorder %s152, %s154
    %p158 = scmp.eq.s32.totalorder %s13, 0
    %p159 = por %p157, %p158
    %p160 = scmp.ne.s32.totalorder %s152, %s154
    %p161 = scmp.eq.s32.totalorder %s18, 1
    %p162 = por %p160, %p161
    %p163 = scmp.ne.s32.totalorder %s154, %s155
    %p164 = scmp.eq.s32.totalorder %s18, 0
    %p165 = por %p163, %p164
    %p166 = scmp.ne.s32.totalorder %s154, %s155
    %p167 = scmp.eq.s32.totalorder %s19, 1
    %p168 = por %p166, %p167
    %p170 = scmp.ne.s32.totalorder %s155, %s169
    %p171 = scmp.eq.s32.totalorder %s19, 0
    %p172 = por %p170, %p171
    %s173 = ssub.s32 %s13, %s20
    %p174 = scmp.eq.s32.totalorder %s173, 0
    %s176 = sadd.s32 %s175, 1
    %s177 = scalar_select %p174, %s175, %s176
    %p180 = pneg %p174
    %p181 = scmp.eq.s32.totalorder %s13, 1
    %p182 = por %p180, %p181
    %p183 = scmp.ne.s32.totalorder %s175, %s178
    %p184 = scmp.eq.s32.totalorder %s13, 0
    %p185 = por %p183, %p184
    %p186 = scmp.ne.s32.totalorder %s175, %s178
    %p187 = scmp.eq.s32.totalorder %s18, 1
    %p188 = por %p186, %p187
    %p189 = scmp.ne.s32.totalorder %s178, %s179
    %p190 = scmp.eq.s32.totalorder %s18, 0
    %p191 = por %p189, %p190
    %p192 = scmp.ne.s32.totalorder %s178, %s179
    %p193 = scmp.eq.s32.totalorder %s19, 1
    %p194 = por %p192, %p193
    %p196 = scmp.ne.s32.totalorder %s179, %s195
    %p197 = scmp.eq.s32.totalorder %s19, 0
    %p198 = por %p196, %p197
    %p199 = scmp.le.s32.totalorder 1, %s13
    %p200 = scmp.lt.s32.totalorder %s13, 3
    %p201 = pnand %p199, %p200
    %p202 = pneg %p201
    // Predicated region
    $region9: #{decoder_forward.1} parent=5 // pred_check
      _
    $region10: #{decoder_forward.1} parent=5 // pred_check_branch
      %204 = sbr.rel (%p201) target = $region12
    $region11: #{decoder_forward.1} parent=5 // pred_region
      %s205 = ssub.s32 %s13, 1
      // Predicated region
      $region13: #{decoder_forward.1} parent=11 // pred_check
        %p206 = pneg %p60
      $region14: #{decoder_forward.1} parent=11 // pred_check_branch
        %208 = sbr.rel (%p206) target = $region16
      $region15: #{decoder_forward.1} parent=11 // pred_region
        _
      $region16: #{decoder_forward.1} parent=11 // pred_fallthru
        _
      // Predicated region
      $region17: #{decoder_forward.1} parent=11 // pred_check
        %p209 = pneg %p81
      $region18: #{decoder_forward.1} parent=11 // pred_check_branch
        %211 = sbr.rel (%p209) target = $region20
      $region19: #{decoder_forward.1} parent=11 // pred_region
        _
      $region20: #{decoder_forward.1} parent=11 // pred_fallthru
        _
      // Predicated region
      $region21: #{decoder_forward.1} parent=11 // pred_check
        %p212 = pneg %p102
      $region22: #{decoder_forward.1} parent=11 // pred_check_branch
        %214 = sbr.rel (%p212) target = $region24
      $region23: #{decoder_forward.1} parent=11 // pred_region
        _
      $region24: #{decoder_forward.1} parent=11 // pred_fallthru
        _
      // Predicated region
      $region25: #{decoder_forward.1} parent=11 // pred_check
        %p215 = pneg %p123
      $region26: #{decoder_forward.1} parent=11 // pred_check_branch
        %217 = sbr.rel (%p215) target = $region28
      $region27: #{decoder_forward.1} parent=11 // pred_region
        _
      $region28: #{decoder_forward.1} parent=11 // pred_fallthru
        _
      // Predicated region
      $region29: #{decoder_forward.1} parent=11 // pred_check
        %p218 = pneg %p144
      $region30: #{decoder_forward.1} parent=11 // pred_check_branch
        %220 = sbr.rel (%p218) target = $region32
      $region31: #{decoder_forward.1} parent=11 // pred_region
        _
      $region32: #{decoder_forward.1} parent=11 // pred_fallthru
        _
      // Predicated region
      $region33: #{decoder_forward.1} parent=11 // pred_check
        %p221 = pneg %p165
      $region34: #{decoder_forward.1} parent=11 // pred_check_branch
        %223 = sbr.rel (%p221) target = $region36
      $region35: #{decoder_forward.1} parent=11 // pred_region
        _
      $region36: #{decoder_forward.1} parent=11 // pred_fallthru
        _
    $region12: #{decoder_forward.1} parent=5 // pred_fallthru
      _
    %p224 = scmp.lt.s32.totalorder %s13, 2
    // Predicated region
    $region37: #{decoder_forward.1} parent=5 // pred_check
      %p225 = pneg %p224
    $region38: #{decoder_forward.1} parent=5 // pred_check_branch
      %227 = sbr.rel (%p225) target = $region40
    $region39: #{decoder_forward.1} parent=5 // pred_region
      // Predicated region
      $region41: #{decoder_forward.1} parent=39 // pred_check
        %p228 = pneg %p33
      $region42: #{decoder_forward.1} parent=39 // pred_check_branch
        %230 = sbr.rel (%p228) target = $region44
      $region43: #{decoder_forward.1} parent=39 // pred_region
        %s231 = smul.u32 16, %s13
        %p232 = scmp.lt.s32.totalorder %s231, 31
        %s233 = scalar_select %p232, %s231, 31
        %s234 = smul.addr %s233, 8
        %s235 = scalar_lea.vmem %s0, %s234
        %s236 = smul.u32 16, %s13
      $region44: #{decoder_forward.1} parent=39 // pred_fallthru
        _
    $region40: #{decoder_forward.1} parent=5 // pred_fallthru
      _
    %p237 = scmp.le.s32.totalorder 1, %s13
    %p238 = scmp.lt.s32.totalorder %s13, 3
    %p239 = pnand %p237, %p238
    %p240 = pneg %p239
    // Predicated region
    $region45: #{decoder_forward.1} parent=5 // pred_check
      _
    $region46: #{decoder_forward.1} parent=5 // pred_check_branch
      %242 = sbr.rel (%p239) target = $region48
    $region47: #{decoder_forward.1} parent=5 // pred_region
      %s243 = ssub.s32 %s13, 1
      %s244 = smul.u32 16, %s18
      %p245 = scmp.lt.s32.totalorder %s244, 31
      %s246 = scalar_select %p245, %s244, 31
      %s247 = smul.addr %s246, 8
      %s248 = scalar_lea.vmem %s0, %s247
      %p249 = pneg %p39
      %p250 = pneg %p36
      %p251 = pneg %p60
      %p252 = pneg %p57
      %p253 = pneg %p81
      %p254 = pneg %p78
      %p255 = pneg %p102
      %p256 = pneg %p99
      %p257 = pneg %p123
      %p258 = pneg %p120
      %p259 = pneg %p144
      %p260 = pneg %p141
      %p261 = pneg %p165
      %p262 = pneg %p162
      %p263 = pneg %p191
      %p264 = pneg %p188
      %s265 = smul.u32 16, %s18
      %p266 = scmp.lt.s32.totalorder %s265, 31
      %s267 = scalar_select %p266, %s265, 31
      %s268 = smul.addr %s267, 8
      %s269 = scalar_lea.vmem %s7, %s268
      %s270 = smul.u32 16, %s18
      %p271 = scmp.lt.s32.totalorder %s270, 31
      %s272 = scalar_select %p271, %s270, 31
      %s273 = smul.addr %s272, 8
      %s274 = scalar_lea.vmem %s0, %s273
      %s275 = smul.u32 16, %s18
      %s276 = smul.u32 16, %s18
      %p277 = scmp.lt.s32.totalorder %s276, 31
      %s278 = scalar_select %p277, %s276, 31
      %s279 = smul.addr %s278, 8
      %s280 = scalar_lea.vmem %s7, %s279
      %s281 = smul.u32 16, %s18
      %v283 = vld [vmem:[%s274] sm:$0xff]
      %v284 = vld [vmem:[%s274 + $0x8] sm:$0xff]
      %v285 = vld [vmem:[%s274 + $0x10] sm:$0xff]
      %v286 = vld [vmem:[%s274 + $0x18] sm:$0xff]
      %v287 = vld [vmem:[%s274 + $0x20] sm:$0xff]
      %v288 = vld [vmem:[%s274 + $0x28] sm:$0xff]
      %v289 = vld [vmem:[%s274 + $0x30] sm:$0xff]
      %v290 = vld [vmem:[%s274 + $0x38] sm:$0xff]
      %v291 = vld [vmem:[%s274 + $0x40] sm:$0xff]
      %v292 = vld [vmem:[%s274 + $0x48] sm:$0xff]
      %v293 = vld [vmem:[%s274 + $0x50] sm:$0xff]
      %v294 = vld [vmem:[%s274 + $0x58] sm:$0xff]
      %v295 = vld [vmem:[%s274 + $0x60] sm:$0xff]
      %v296 = vld [vmem:[%s274 + $0x68] sm:$0xff]
      %v297 = vld [vmem:[%s274 + $0x70] sm:$0xff]
      %v298 = vld [vmem:[%s274 + $0x78] sm:$0xff]
      %v299 = vpack.c.bf16 %v284, %v283
      %v300 = vpack.c.bf16 %v286, %v285
      %v301 = vpack.c.bf16 %v288, %v287
      %v302 = vpack.c.bf16 %v290, %v289
      %v303 = vpack.c.bf16 %v292, %v291
      %v304 = vpack.c.bf16 %v294, %v293
      %v305 = vpack.c.bf16 %v296, %v295
      %v306 = vpack.c.bf16 %v298, %v297
      %v307 = vld [vmem:[%s1] sm:$0xf]
      %v308 = vld [vmem:[%s2] sm:$0x1]
      %v310 = vlaneseq
      %v311 = vshrl.u32 %v310, 7
      %v312 = vsub.s32 0, %v311
      %v313 = vrot.slane %v308, %v312
      %vm315 = vcmask 64512
      %v317 = vsel %vm315, %v299, 0
      %v320 = vsel %vm315, %v300, 0
      %v323 = vsel %vm315, %v301, 0
      %v326 = vsel %vm315, %v302, 0
      %v329 = vsel %vm315, %v303, 0
      %v332 = vsel %vm315, %v304, 0
      %v335 = vsel %vm315, %v305, 0
      %v338 = vsel %vm315, %v306, 0
      %vm340 = vcmask 1043456
      %v342 = vsel %vm340, %v307, 0
      %344 = vmatprep.subr.bf16.mxu0 0
      %345 = vmatpush1.bf16.msra.mxu0 %v342
      %346 = vmatprep.subr.bf16.mxu0 0
      %347 = vmatpush1.bf16.msra.mxu0 0
      %348 = vmatprep.subr.bf16.mxu0 0
      %349 = vmatpush1.bf16.msra.mxu0 0
      %350 = vmatprep.subr.bf16.mxu0 0
      %351 = vmatpush1.bf16.msra.mxu0 0
      %352 = vmatprep.subr.bf16.mxu0 0
      %353 = vmatpush1.bf16.msra.mxu0 0
      %354 = vmatprep.subr.bf16.mxu0 0
      %355 = vmatpush1.bf16.msra.mxu0 0
      %356 = vmatprep.subr.bf16.mxu0 0
      %357 = vmatpush1.bf16.msra.mxu0 0
      %358 = vmatprep.subr.bf16.mxu0 0
      %359 = vmatpush1.bf16.msra.mxu0 0
      %360 = vmatprep.subr.bf16.mxu0 0
      %361 = vmatpush1.bf16.msra.mxu0 0
      %362 = vmatprep.subr.bf16.mxu0 0
      %363 = vmatpush1.bf16.msra.mxu0 0
      %364 = vmatprep.subr.bf16.mxu0 0
      %365 = vmatpush1.bf16.msra.mxu0 0
      %366 = vmatprep.subr.bf16.mxu0 0
      %367 = vmatpush1.bf16.msra.mxu0 0
      %368 = vmatprep.subr.bf16.mxu0 0
      %369 = vmatpush1.bf16.msra.mxu0 0
      %370 = vmatprep.subr.bf16.mxu0 0
      %371 = vmatpush1.bf16.msra.mxu0 0
      %372 = vmatprep.subr.bf16.mxu0 0
      %373 = vmatpush1.bf16.msra.mxu0 0
      %374 = vmatprep.subr.bf16.mxu0 0
      %375 = vmatpush1.bf16.msra.mxu0 0
      %376 = vmatprep.mubr.bf16.mxu0 0
      %377 = vmatmul.mubr.bf16.gmra.mrb[0].mxu0 %v317
      %v378 = vpop.f32.mrb[0].mxu0
      %v379 = vadd.f32 %v313, %v378
      %v380 = vpop.f32.mrb[0].mxu0
      %v381 = vpop.f32.mrb[0].mxu0
      %v382 = vadd.f32 %v313, %v381
      %v383 = vpop.f32.mrb[0].mxu0
      %384 = vmatprep.mubr.bf16.mxu0 0
      %385 = vmatmul.mubr.bf16.gmra.mrb[0].mxu0 %v320
      %v386 = vpop.f32.mrb[0].mxu0
      %v387 = vadd.f32 %v313, %v386
      %v388 = vpop.f32.mrb[0].mxu0
      %v389 = vpop.f32.mrb[0].mxu0
      %v390 = vadd.f32 %v313, %v389
      %v391 = vpop.f32.mrb[0].mxu0
      %392 = vmatprep.mubr.bf16.mxu0 0
      %393 = vmatmul.mubr.bf16.gmra.mrb[0].mxu0 %v323
      %v394 = vpop.f32.mrb[0].mxu0
      %v395 = vadd.f32 %v313, %v394
      %v396 = vpop.f32.mrb[0].mxu0
      %v397 = vpop.f32.mrb[0].mxu0
      %v398 = vadd.f32 %v313, %v397
      %v399 = vpop.f32.mrb[0].mxu0
      %400 = vmatprep.mubr.bf16.mxu0 0
      %401 = vmatmul.mubr.bf16.gmra.mrb[0].mxu0 %v326
      %v402 = vpop.f32.mrb[0].mxu0
      %v403 = vadd.f32 %v313, %v402
      %v404 = vpop.f32.mrb[0].mxu0
      %v405 = vpop.f32.mrb[0].mxu0
      %v406 = vadd.f32 %v313, %v405
      %v407 = vpop.f32.mrb[0].mxu0
      %408 = vmatprep.mubr.bf16.mxu0 0
      %409 = vmatmul.mubr.bf16.gmra.mrb[0].mxu0 %v329
      %v410 = vpop.f32.mrb[0].mxu0
      %v411 = vadd.f32 %v313, %v410
      %v412 = vpop.f32.mrb[0].mxu0
      %v413 = vpop.f32.mrb[0].mxu0
      %v414 = vadd.f32 %v313, %v413
      %v415 = vpop.f32.mrb[0].mxu0
      %416 = vmatprep.mubr.bf16.mxu0 0
      %417 = vmatmul.mubr.bf16.gmra.mrb[0].mxu0 %v332
      %v418 = vpop.f32.mrb[0].mxu0
      %v419 = vadd.f32 %v313, %v418
      %v420 = vpop.f32.mrb[0].mxu0
      %v421 = vpop.f32.mrb[0].mxu0
      %v422 = vadd.f32 %v313, %v421
      %v423 = vpop.f32.mrb[0].mxu0
      %424 = vmatprep.mubr.bf16.mxu0 0
      %425 = vmatmul.mubr.bf16.gmra.mrb[0].mxu0 %v335
      %v426 = vpop.f32.mrb[0].mxu0
      %v427 = vadd.f32 %v313, %v426
      %v428 = vpop.f32.mrb[0].mxu0
      %v429 = vpop.f32.mrb[0].mxu0
      %v430 = vadd.f32 %v313, %v429
      %v431 = vpop.f32.mrb[0].mxu0
      %432 = vmatprep.mubr.bf16.mxu0 0
      %433 = vmatmul.mubr.bf16.gmra.mrb[0].mxu0 %v338
      %v434 = vpop.f32.mrb[0].mxu0
      %v435 = vadd.f32 %v313, %v434
      %v436 = vpop.f32.mrb[0].mxu0
      %v437 = vpop.f32.mrb[0].mxu0
      %v438 = vadd.f32 %v313, %v437
      %v439 = vpop.f32.mrb[0].mxu0
      %440 = vdwg.mxu0
      %v441 = vmax.f32 %v379, 0.0
      %v442 = vmax.f32 %v382, 0.0
      %v443 = vmax.f32 %v387, 0.0
      %v444 = vmax.f32 %v390, 0.0
      %v445 = vmax.f32 %v395, 0.0
      %v446 = vmax.f32 %v398, 0.0
      %v447 = vmax.f32 %v403, 0.0
      %v448 = vmax.f32 %v406, 0.0
      %v449 = vmax.f32 %v411, 0.0
      %v450 = vmax.f32 %v414, 0.0
      %v451 = vmax.f32 %v419, 0.0
      %v452 = vmax.f32 %v422, 0.0
      %v453 = vmax.f32 %v427, 0.0
      %v454 = vmax.f32 %v430, 0.0
      %v455 = vmax.f32 %v435, 0.0
      %v456 = vmax.f32 %v438, 0.0
      %v457 = vpack.c.bf16 %v442, %v441
      %v458 = vpack.c.bf16 %v444, %v443
      %v459 = vpack.c.bf16 %v446, %v445
      %v460 = vpack.c.bf16 %v448, %v447
      %v461 = vpack.c.bf16 %v450, %v449
      %v462 = vpack.c.bf16 %v452, %v451
      %v463 = vpack.c.bf16 %v454, %v453
      %v464 = vpack.c.bf16 %v456, %v455
      %v465 = vld [vmem:[%s3] sm:$0xf]
      %v466 = vld [vmem:[%s3 + $0x4] sm:$0xf]
      %v467 = vld [vmem:[%s3 + $0x8] sm:$0xf]
      %v468 = vld [vmem:[%s3 + $0xc] sm:$0xf]
      %v469 = vld [vmem:[%s3 + $0x10] sm:$0xf]
      %v470 = vld [vmem:[%s3 + $0x14] sm:$0xf]
      %v471 = vld [vmem:[%s3 + $0x18] sm:$0xf]
      %v472 = vld [vmem:[%s3 + $0x1c] sm:$0xf]
      %v473 = vld [vmem:[%s4] sm:$0x1]
      %v475 = vlaneseq
      %v476 = vshrl.u32 %v475, 7
      %v477 = vsub.s32 0, %v476
      %v478 = vrot.slane %v473, %v477
      %v488 = vunpack.c.l.b16 %v465
      %v489 = vunpack.c.l.b16 %v466
      %v490 = vunpack.c.l.b16 %v467
      %v491 = vunpack.c.l.b16 %v468
      %v492 = vunpack.c.l.b16 %v469
      %v493 = vunpack.c.l.b16 %v470
      %v494 = vunpack.c.l.b16 %v471
      %v495 = vunpack.c.l.b16 %v472
      %v496 = vpack.c.b16 %v489, %v488
      %v497 = vpack.c.b16 %v491, %v490
      %v498 = vpack.c.b16 %v493, %v492
      %v499 = vpack.c.b16 %v495, %v494
      %vm504 = vcmask 523264
      %v506 = vsel %vm504, %v457, 0
      %v509 = vsel %vm504, %v458, 0
      %v512 = vsel %vm504, %v459, 0
      %v515 = vsel %vm504, %v460, 0
      %v518 = vsel %vm504, %v461, 0
      %v521 = vsel %vm504, %v462, 0
      %v524 = vsel %vm504, %v463, 0
      %v527 = vsel %vm504, %v464, 0
      %529 = vmatprep.subr.bf16.mxu0 0
      %530 = vmatpush1.bf16.msra.mxu0 %v496
      %531 = vmatprep.subr.bf16.mxu0 0
      %532 = vmatpush1.bf16.msra.mxu0 %v497
      %533 = vmatprep.subr.bf16.mxu0 0
      %534 = vmatpush1.bf16.msra.mxu0 %v498
      %535 = vmatprep.subr.bf16.mxu0 0
      %536 = vmatpush1.bf16.msra.mxu0 %v499
      %537 = vmatprep.subr.bf16.mxu0 0
      %538 = vmatpush1.bf16.msra.mxu0 0
      %539 = vmatprep.subr.bf16.mxu0 0
      %540 = vmatpush1.bf16.msra.mxu0 0
      %541 = vmatprep.subr.bf16.mxu0 0
      %542 = vmatpush1.bf16.msra.mxu0 0
      %543 = vmatprep.subr.bf16.mxu0 0
      %544 = vmatpush1.bf16.msra.mxu0 0
      %545 = vmatprep.subr.bf16.mxu0 0
      %546 = vmatpush1.bf16.msra.mxu0 0
      %547 = vmatprep.subr.bf16.mxu0 0
      %548 = vmatpush1.bf16.msra.mxu0 0
      %549 = vmatprep.subr.bf16.mxu0 0
      %550 = vmatpush1.bf16.msra.mxu0 0
      %551 = vmatprep.subr.bf16.mxu0 0
      %552 = vmatpush1.bf16.msra.mxu0 0
      %553 = vmatprep.subr.bf16.mxu0 0
      %554 = vmatpush1.bf16.msra.mxu0 0
      %555 = vmatprep.subr.bf16.mxu0 0
      %556 = vmatpush1.bf16.msra.mxu0 0
      %557 = vmatprep.subr.bf16.mxu0 0
      %558 = vmatpush1.bf16.msra.mxu0 0
      %559 = vmatprep.subr.bf16.mxu0 0
      %560 = vmatpush1.bf16.msra.mxu0 0
      %561 = vmatprep.mubr.bf16.mxu0 0
      %562 = vmatmul.mubr.bf16.gmra.mrb[0].mxu0 %v506
      %v563 = vpop.f32.mrb[0].mxu0
      %v564 = vadd.f32 %v478, %v563
      %v565 = vpop.f32.mrb[0].mxu0
      %v566 = vpop.f32.mrb[0].mxu0
      %v567 = vadd.f32 %v478, %v566
      %v568 = vpop.f32.mrb[0].mxu0
      %569 = vmatprep.mubr.bf16.mxu0 0
      %570 = vmatmul.mubr.bf16.gmra.mrb[0].mxu0 %v509
      %v571 = vpop.f32.mrb[0].mxu0
      %v572 = vadd.f32 %v478, %v571
      %v573 = vpop.f32.mrb[0].mxu0
      %v574 = vpop.f32.mrb[0].mxu0
      %v575 = vadd.f32 %v478, %v574
      %v576 = vpop.f32.mrb[0].mxu0
      %577 = vmatprep.mubr.bf16.mxu0 0
      %578 = vmatmul.mubr.bf16.gmra.mrb[0].mxu0 %v512
      %v579 = vpop.f32.mrb[0].mxu0
      %v580 = vadd.f32 %v478, %v579
      %v581 = vpop.f32.mrb[0].mxu0
      %v582 = vpop.f32.mrb[0].mxu0
      %v583 = vadd.f32 %v478, %v582
      %v584 = vpop.f32.mrb[0].mxu0
      %585 = vmatprep.mubr.bf16.mxu0 0
      %586 = vmatmul.mubr.bf16.gmra.mrb[0].mxu0 %v515
      %v587 = vpop.f32.mrb[0].mxu0
      %v588 = vadd.f32 %v478, %v587
      %v589 = vpop.f32.mrb[0].mxu0
      %v590 = vpop.f32.mrb[0].mxu0
      %v591 = vadd.f32 %v478, %v590
      %v592 = vpop.f32.mrb[0].mxu0
      %593 = vmatprep.mubr.bf16.mxu0 0
      %594 = vmatmul.mubr.bf16.gmra.mrb[0].mxu0 %v518
      %v595 = vpop.f32.mrb[0].mxu0
      %v596 = vadd.f32 %v478, %v595
      %v597 = vpop.f32.mrb[0].mxu0
      %v598 = vpop.f32.mrb[0].mxu0
      %v599 = vadd.f32 %v478, %v598
      %v600 = vpop.f32.mrb[0].mxu0
      %601 = vmatprep.mubr.bf16.mxu0 0
      %602 = vmatmul.mubr.bf16.gmra.mrb[0].mxu0 %v521
      %v603 = vpop.f32.mrb[0].mxu0
      %v604 = vadd.f32 %v478, %v603
      %v605 = vpop.f32.mrb[0].mxu0
      %v606 = vpop.f32.mrb[0].mxu0
      %v607 = vadd.f32 %v478, %v606
      %v608 = vpop.f32.mrb[0].mxu0
      %609 = vmatprep.mubr.bf16.mxu0 0
      %610 = vmatmul.mubr.bf16.gmra.mrb[0].mxu0 %v524
      %v611 = vpop.f32.mrb[0].mxu0
      %v612 = vadd.f32 %v478, %v611
      %v613 = vpop.f32.mrb[0].mxu0
      %v614 = vpop.f32.mrb[0].mxu0
      %v615 = vadd.f32 %v478, %v614
      %v616 = vpop.f32.mrb[0].mxu0
      %617 = vmatprep.mubr.bf16.mxu0 0
      %618 = vmatmul.mubr.bf16.gmra.mrb[0].mxu0 %v527
      %v619 = vpop.f32.mrb[0].mxu0
      %v620 = vadd.f32 %v478, %v619
      %v621 = vpop.f32.mrb[0].mxu0
      %v622 = vpop.f32.mrb[0].mxu0
      %v623 = vadd.f32 %v478, %v622
      %v624 = vpop.f32.mrb[0].mxu0
      %625 = vdwg.mxu0
      %v626 = vmax.f32 %v564, 0.0
      %v627 = vmax.f32 %v567, 0.0
      %v628 = vmax.f32 %v572, 0.0
      %v629 = vmax.f32 %v575, 0.0
      %v630 = vmax.f32 %v580, 0.0
      %v631 = vmax.f32 %v583, 0.0
      %v632 = vmax.f32 %v588, 0.0
      %v633 = vmax.f32 %v591, 0.0
      %v634 = vmax.f32 %v596, 0.0
      %v635 = vmax.f32 %v599, 0.0
      %v636 = vmax.f32 %v604, 0.0
      %v637 = vmax.f32 %v607, 0.0
      %v638 = vmax.f32 %v612, 0.0
      %v639 = vmax.f32 %v615, 0.0
      %v640 = vmax.f32 %v620, 0.0
      %v641 = vmax.f32 %v623, 0.0
      %v642 = vpack.c.bf16 %v627, %v626
      %v643 = vpack.c.bf16 %v629, %v628
      %v644 = vpack.c.bf16 %v631, %v630
      %v645 = vpack.c.bf16 %v633, %v632
      %v646 = vpack.c.bf16 %v635, %v634
      %v647 = vpack.c.bf16 %v637, %v636
      %v648 = vpack.c.bf16 %v639, %v638
      %v649 = vpack.c.bf16 %v641, %v640
      %v650 = vld [vmem:[%s5] sm:$0xf]
      %v651 = vld [vmem:[%s5 + $0x4] sm:$0xf]
      %v652 = vld [vmem:[%s5 + $0x8] sm:$0xf]
      %v653 = vld [vmem:[%s5 + $0xc] sm:$0xf]
      %v654 = vld [vmem:[%s5 + $0x10] sm:$0xf]
      %v655 = vld [vmem:[%s5 + $0x14] sm:$0xf]
      %v656 = vld [vmem:[%s5 + $0x18] sm:$0xf]
      %v657 = vld [vmem:[%s5 + $0x1c] sm:$0xf]
      %v658 = vld [vmem:[%s6] sm:$0x1]
      %v660 = vlaneseq
      %v661 = vshrl.u32 %v660, 7
      %v662 = vsub.s32 0, %v661
      %v663 = vrot.slane %v658, %v662
      %v673 = vunpack.c.l.b16 %v650
      %v674 = vunpack.c.l.b16 %v651
      %v675 = vunpack.c.l.b16 %v652
      %v676 = vunpack.c.l.b16 %v653
      %v677 = vunpack.c.l.b16 %v654
      %v678 = vunpack.c.l.b16 %v655
      %v679 = vunpack.c.l.b16 %v656
      %v680 = vunpack.c.l.b16 %v657
      %v681 = vpack.c.b16 %v674, %v673
      %v682 = vpack.c.b16 %v676, %v675
      %v683 = vpack.c.b16 %v678, %v677
      %v684 = vpack.c.b16 %v680, %v679
      %v690 = vsel %vm504, %v642, 0
      %v693 = vsel %vm504, %v643, 0
      %v696 = vsel %vm504, %v644, 0
      %v699 = vsel %vm504, %v645, 0
      %v702 = vsel %vm504, %v646, 0
      %v705 = vsel %vm504, %v647, 0
      %v708 = vsel %vm504, %v648, 0
      %v711 = vsel %vm504, %v649, 0
      %713 = vmatprep.subr.bf16.mxu0 0
      %714 = vmatpush1.bf16.msra.mxu0 %v681
      %715 = vmatprep.subr.bf16.mxu0 0
      %716 = vmatpush1.bf16.msra.mxu0 %v682
      %717 = vmatprep.subr.bf16.mxu0 0
      %718 = vmatpush1.bf16.msra.mxu0 %v683
      %719 = vmatprep.subr.bf16.mxu0 0
      %720 = vmatpush1.bf16.msra.mxu0 %v684
      %721 = vmatprep.subr.bf16.mxu0 0
      %722 = vmatpush1.bf16.msra.mxu0 0
      %723 = vmatprep.subr.bf16.mxu0 0
      %724 = vmatpush1.bf16.msra.mxu0 0
      %725 = vmatprep.subr.bf16.mxu0 0
      %726 = vmatpush1.bf16.msra.mxu0 0
      %727 = vmatprep.subr.bf16.mxu0 0
      %728 = vmatpush1.bf16.msra.mxu0 0
      %729 = vmatprep.subr.bf16.mxu0 0
      %730 = vmatpush1.bf16.msra.mxu0 0
      %731 = vmatprep.subr.bf16.mxu0 0
      %732 = vmatpush1.bf16.msra.mxu0 0
      %733 = vmatprep.subr.bf16.mxu0 0
      %734 = vmatpush1.bf16.msra.mxu0 0
      %735 = vmatprep.subr.bf16.mxu0 0
      %736 = vmatpush1.bf16.msra.mxu0 0
      %737 = vmatprep.subr.bf16.mxu0 0
      %738 = vmatpush1.bf16.msra.mxu0 0
      %739 = vmatprep.subr.bf16.mxu0 0
      %740 = vmatpush1.bf16.msra.mxu0 0
      %741 = vmatprep.subr.bf16.mxu0 0
      %742 = vmatpush1.bf16.msra.mxu0 0
      %743 = vmatprep.subr.bf16.mxu0 0
      %744 = vmatpush1.bf16.msra.mxu0 0
      %745 = vmatprep.mubr.bf16.mxu0 0
      %746 = vmatmul.mubr.bf16.gmra.mrb[0].mxu0 %v690
      %v747 = vpop.f32.mrb[0].mxu0
      %v748 = vadd.f32 %v663, %v747
      %v749 = vpop.f32.mrb[0].mxu0
      %v750 = vpop.f32.mrb[0].mxu0
      %v751 = vadd.f32 %v663, %v750
      %v752 = vpop.f32.mrb[0].mxu0
      %753 = vmatprep.mubr.bf16.mxu0 0
      %754 = vmatmul.mubr.bf16.gmra.mrb[0].mxu0 %v693
      %v755 = vpop.f32.mrb[0].mxu0
      %v756 = vadd.f32 %v663, %v755
      %v757 = vpop.f32.mrb[0].mxu0
      %v758 = vpop.f32.mrb[0].mxu0
      %v759 = vadd.f32 %v663, %v758
      %v760 = vpop.f32.mrb[0].mxu0
      %761 = vmatprep.mubr.bf16.mxu0 0
      %762 = vmatmul.mubr.bf16.gmra.mrb[0].mxu0 %v696
      %v763 = vpop.f32.mrb[0].mxu0
      %v764 = vadd.f32 %v663, %v763
      %v765 = vpop.f32.mrb[0].mxu0
      %v766 = vpop.f32.mrb[0].mxu0
      %v767 = vadd.f32 %v663, %v766
      %v768 = vpop.f32.mrb[0].mxu0
      %769 = vmatprep.mubr.bf16.mxu0 0
      %770 = vmatmul.mubr.bf16.gmra.mrb[0].mxu0 %v699
      %v771 = vpop.f32.mrb[0].mxu0
      %v772 = vadd.f32 %v663, %v771
      %v773 = vpop.f32.mrb[0].mxu0
      %v774 = vpop.f32.mrb[0].mxu0
      %v775 = vadd.f32 %v663, %v774
      %v776 = vpop.f32.mrb[0].mxu0
      %777 = vmatprep.mubr.bf16.mxu0 0
      %778 = vmatmul.mubr.bf16.gmra.mrb[0].mxu0 %v702
      %v779 = vpop.f32.mrb[0].mxu0
      %v780 = vadd.f32 %v663, %v779
      %v781 = vpop.f32.mrb[0].mxu0
      %v782 = vpop.f32.mrb[0].mxu0
      %v783 = vadd.f32 %v663, %v782
      %v784 = vpop.f32.mrb[0].mxu0
      %785 = vmatprep.mubr.bf16.mxu0 0
      %786 = vmatmul.mubr.bf16.gmra.mrb[0].mxu0 %v705
      %v787 = vpop.f32.mrb[0].mxu0
      %v788 = vadd.f32 %v663, %v787
      %v789 = vpop.f32.mrb[0].mxu0
      %v790 = vpop.f32.mrb[0].mxu0
      %v791 = vadd.f32 %v663, %v790
      %v792 = vpop.f32.mrb[0].mxu0
      %793 = vmatprep.mubr.bf16.mxu0 0
      %794 = vmatmul.mubr.bf16.gmra.mrb[0].mxu0 %v708
      %v795 = vpop.f32.mrb[0].mxu0
      %v796 = vadd.f32 %v663, %v795
      %v797 = vpop.f32.mrb[0].mxu0
      %v798 = vpop.f32.mrb[0].mxu0
      %v799 = vadd.f32 %v663, %v798
      %v800 = vpop.f32.mrb[0].mxu0
      %801 = vmatprep.mubr.bf16.mxu0 0
      %802 = vmatmul.mubr.bf16.gmra.mrb[0].mxu0 %v711
      %v803 = vpop.f32.mrb[0].mxu0
      %v804 = vadd.f32 %v663, %v803
      %v805 = vpop.f32.mrb[0].mxu0
      %v806 = vpop.f32.mrb[0].mxu0
      %v807 = vadd.f32 %v663, %v806
      %v808 = vpop.f32.mrb[0].mxu0
      %809 = vdwg.mxu0
      %810 = vst [vmem:[%s280] sm:$0xff] %v748
      %811 = vst [vmem:[%s280 + $0x8] sm:$0xff] %v751
      %812 = vst [vmem:[%s280 + $0x10] sm:$0xff] %v756
      %813 = vst [vmem:[%s280 + $0x18] sm:$0xff] %v759
      %814 = vst [vmem:[%s280 + $0x20] sm:$0xff] %v764
      %815 = vst [vmem:[%s280 + $0x28] sm:$0xff] %v767
      %816 = vst [vmem:[%s280 + $0x30] sm:$0xff] %v772
      %817 = vst [vmem:[%s280 + $0x38] sm:$0xff] %v775
      %818 = vst [vmem:[%s280 + $0x40] sm:$0xff] %v780
      %819 = vst [vmem:[%s280 + $0x48] sm:$0xff] %v783
      %820 = vst [vmem:[%s280 + $0x50] sm:$0xff] %v788
      %821 = vst [vmem:[%s280 + $0x58] sm:$0xff] %v791
      %822 = vst [vmem:[%s280 + $0x60] sm:$0xff] %v796
      %823 = vst [vmem:[%s280 + $0x68] sm:$0xff] %v799
      %824 = vst [vmem:[%s280 + $0x70] sm:$0xff] %v804
      %825 = vst [vmem:[%s280 + $0x78] sm:$0xff] %v807
      %s826 = smul.u32 16, %s18
      %p827 = scmp.lt.s32.totalorder %s826, 31
      %s828 = scalar_select %p827, %s826, 31
      %s829 = smul.addr %s828, 8
      %s830 = scalar_lea.vmem %s7, %s829
      // Predicated region
      $region49: #{decoder_forward.1} parent=47 // pred_check
        %p831 = pneg %p188
      $region50: #{decoder_forward.1} parent=47 // pred_check_branch
        %833 = sbr.rel (%p831) target = $region52
      $region51: #{decoder_forward.1} parent=47 // pred_region
        %s834 = smul.u32 16, %s18
      $region52: #{decoder_forward.1} parent=47 // pred_fallthru
        _
    $region48: #{decoder_forward.1} parent=5 // pred_fallthru
      _
    %p835 = scmp.le.s32.totalorder 2, %s13
    // Predicated region
    $region53: #{decoder_forward.1} parent=5 // pred_check
      %p836 = pneg %p835
    $region54: #{decoder_forward.1} parent=5 // pred_check_branch
      %838 = sbr.rel (%p836) target = $region56
    $region55: #{decoder_forward.1} parent=5 // pred_region
      %s839 = ssub.s32 %s13, 2
      // Predicated region
      $region57: #{decoder_forward.1} parent=55 // pred_check
        %p840 = pneg %p194
      $region58: #{decoder_forward.1} parent=55 // pred_check_branch
        %842 = sbr.rel (%p840) target = $region60
      $region59: #{decoder_forward.1} parent=55 // pred_region
        %s843 = smul.u32 16, %s19
        %p844 = scmp.lt.s32.totalorder %s843, 31
        %s845 = scalar_select %p844, %s843, 31
        %s846 = smul.addr %s845, 8
        %s847 = scalar_lea.vmem %s7, %s846
      $region60: #{decoder_forward.1} parent=55 // pred_fallthru
        _
    $region56: #{decoder_forward.1} parent=5 // pred_fallthru
      _
  $region6: #{decoder_forward.1} parent=0 // loop_footer
    %s17 = sadd.s32 1, %s13
  $region7: #{decoder_forward.1} parent=0 // loop_footer_branch
    %12 = sbr.rel target = $region3
  $region8: #{decoder_forward.1} parent=0 // loop_exit
    _

</llo_original>
